<compile_context>
chip_gen: v7x
topology: tpu7x:2x2x1
jax: 0.10.0
libtpu: 0.0.40
codegen_flags: <defaults>
</compile_context>

<pallas_src>
import functools

import jax
import jax.numpy as jnp
from jax.experimental import pallas as pl
from jax.experimental.pallas import tpu as pltpu


def _round_up(a, b):
    return (a + b - 1) // b * b


# ----------------------------------------------------------------------------
# Pallas kernel: fused conv(KHxKW, stride 1, SAME) + folded-BN bias + ReLU,
# one image x one OC tile per grid step, single MXU matmul.
# ----------------------------------------------------------------------------
def _rep_conv_bn_kernel(x_ref, w_ref, b_ref, o_ref, tap_ref, *,
                        Wp, KH, KW, C, m_pad, activate):
    # x_ref:   (1, C, Lp)        zero-padded image, flattened row-major (stride Wp)
    # w_ref:   (OC_t, KH*KW*C)   BN-scale-folded weight, tap-major columns
    # b_ref:   (OC_t, 1)         folded BN bias (f32)
    # o_ref:   (1, OC_t, m_pad)  flattened output, lane-padded to a 128 multiple
    # tap_ref: (KH*KW*C, m_pad)  VMEM scratch: the KH*KW shifted image views
    x = x_ref[0]                                   # (C, Lp): read x once per step

    # Build the tap matrix once: row block t = kh*KW+kw holds the image shifted
    # by the static lane offset kh*Wp+kw.  (Static slices; the pad/guard rows in
    # x make every slice in-bounds and zero outside the true image.)
    for kh in range(KH):
        for kw in range(KW):
            t = kh * KW + kw
            off = kh * Wp + kw
            tap_ref[t * C:(t + 1) * C, :] = x[:, off:off + m_pad]

    # Single fused MXU matmul over the KH*KW*C contraction dim, f32 accumulate.
    y = jnp.dot(w_ref[...], tap_ref[...], preferred_element_type=jnp.float32)
    y = y + b_ref[...]                             # (OC_t, 1) lane-broadcast bias
    if activate == "relu":
        y = jnp.maximum(y, 0.0)
    elif activate is not None:
        # TODO(synk): map other torch.nn.functional activations as needed.
        raise NotImplementedError(activate)
    o_ref[0] = y.astype(o_ref.dtype)               # lane-dense, unmasked store


def rep_conv_bn_block(
    x_nchw,        # (N, C, H, W)
    conv_w,        # (OC, IC, KH, KW)  -- torch Conv2d weight layout
    conv_b,        # (OC,)
    bn_gamma,      # (OC,)
    bn_beta,       # (OC,)
    bn_mean,       # (OC,)
    bn_var,        # (OC,)
    *,
    eps=1e-5,
    activate="relu",
    compute_dtype=None,     # e.g. jnp.bfloat16 on v6e/v7x (f32 acc kept in-kernel)
    oc_tile=None,           # OC tile size: second parallel grid axis / VMEM bound
    vmem_limit_bytes=None,  # raise once tiles grow beyond toy size (v5e: 16 MiB default)
):
    N, C, H, W = x_nchw.shape
    OC, IC, KH, KW = conv_w.shape
    assert IC == C
    # Module spec used here: stride=1, padding=K//2 ("same"), odd kernel size.
    assert KH % 2 == 1 and KW % 2 == 1, "only odd kernels / SAME padding supported"
    ph, pw = KH // 2, KW // 2

    Wp = W + 2 * pw                        # padded row width = output row stride
    m_out = H * Wp                         # useful flattened output length
    m_pad = _round_up(m_out, 128)          # lane-dense width (unmasked vst)
    off_max = (KH - 1) * Wp + (KW - 1)     # largest static tap shift
    # Pad enough bottom zero rows that every tap's m_pad-wide slice is in-bounds
    # (this automatically covers the conv's own bottom SAME padding).
    rows = -(-(off_max + m_pad) // Wp)     # ceil division
    pad_bottom = rows - ph - H             # >= ph by construction
    Lp = rows * Wp

    if oc_tile is None:
        # Single tile at small OC.  Pass a multiple of 8 (< OC) to get a second
        # parallel grid axis (v7x dual TensorCore) and to bound the per-step
        # f32 result / VMEM footprint (keep oc_tile * m_pad * 4B modest).
        oc_tile = OC
    assert OC % oc_tile == 0 and (oc_tile == OC or oc_tile % 8 == 0)
    n_oc = OC // oc_tile

    # ---- fold BN (inference running stats) into the conv weight / bias ----
    scale = bn_gamma / jnp.sqrt(bn_var + eps)                   # (OC,)
    w_fold = conv_w * scale[:, None, None, None]                # (OC, C, KH, KW)
    b_fold = (conv_b - bn_mean) * scale + bn_beta               # (OC,)
    # Tap-major fused weight: column block t = kh*KW+kw holds w_fold[:, :, kh, kw],
    # matching the tap-scratch row order in the kernel.
    w_fused = jnp.transpose(w_fold, (0, 2, 3, 1)).reshape(OC, KH * KW * C)

    # ---- zero-pad spatially (NCHW kept, no layout transpose), flatten H,W ----
    # NOTE: this pad and the final trim below are each one extra full-tensor
    # HBM pass; accepted for now (see TODO at top of file).
    xp = jnp.pad(x_nchw, ((0, 0), (0, 0), (ph, pad_bottom), (pw, pw)))
    xp = xp.reshape(N, C, Lp)                                   # contiguous reshape

    if compute_dtype is not None:
        xp = xp.astype(compute_dtype)
        w_fused = w_fused.astype(compute_dtype)                 # acc stays f32

    kernel = functools.partial(
        _rep_conv_bn_kernel,
        Wp=Wp, KH=KH, KW=KW, C=C, m_pad=m_pad, activate=activate,
    )

    out_flat = pl.pallas_call(
        kernel,
        out_shape=jax.ShapeDtypeStruct((N, OC, m_pad), x_nchw.dtype),
        grid_spec=pltpu.PrefetchScalarGridSpec(
            num_scalar_prefetch=0,
            grid=(N, n_oc),   # image axis x OC-tile axis, both core-parallel
            in_specs=[
                pl.BlockSpec((1, C, Lp), lambda n, oc: (n, 0, 0)),
                pl.BlockSpec((oc_tile, KH * KW * C), lambda n, oc: (oc, 0)),
                pl.BlockSpec((oc_tile, 1), lambda n, oc: (oc, 0)),
            ],
            out_specs=pl.BlockSpec((1, oc_tile, m_pad), lambda n, oc: (n, oc, 0)),
            scratch_shapes=[pltpu.VMEM((KH * KW * C, m_pad), xp.dtype)],
        ),
        compiler_params=pltpu.CompilerParams(
            dimension_semantics=("parallel", "parallel"),
            vmem_limit_bytes=vmem_limit_bytes,
        ),
    )(xp, w_fused, b_fold.reshape(OC, 1))

    # Trim the 128-lane pad and the Wp-wide row pad back to (N, OC, H, W).
    # (Single fused XLA slice+reshape+slice; a downstream consumer could fuse it.)
    out = out_flat[:, :, :m_out].reshape(N, OC, H, Wp)[:, :, :, :W]
    return out


# ----------------------------------------------------------------------------
# Pure-JAX reference (conv + bias + BN(eval) + relu), for correctness checking.
# ----------------------------------------------------------------------------
def _reference(x_nchw, conv_w, conv_b, g, b, m, v, eps=1e-5, activate="relu"):
    y = jax.lax.conv_general_dilated(
        x_nchw, conv_w, window_strides=(1, 1), padding="SAME",
        dimension_numbers=("NCHW", "OIHW", "NCHW"),
    ) + conv_b.reshape(1, -1, 1, 1)
    scale = g / jnp.sqrt(v + eps)
    y = (y - m.reshape(1, -1, 1, 1)) * scale.reshape(1, -1, 1, 1) + b.reshape(1, -1, 1, 1)
    if activate == "relu":
        y = jnp.maximum(y, 0.0)
    return y


if __name__ == "__main__":
    # Module args (synthetic, deterministic):
    #   Conv2d(in_channels=4, out_channels=8, kernel_size=3, stride=1, padding=1)
    #   BatchNorm2d(8), activate='relu', deploy=False (inference BN, running stats)
    N, C, H, W, OC, K = 2, 4, 16, 16, 8, 3

    key = jax.random.PRNGKey(0)
    kx, kw_, kb, kg, kbe, km, kv = jax.random.split(key, 7)

    x = jax.random.normal(kx, (N, C, H, W), dtype=jnp.float32)
    conv_w = jax.random.normal(kw_, (OC, C, K, K), dtype=jnp.float32) * 0.1
    conv_b = jax.random.normal(kb, (OC,), dtype=jnp.float32) * 0.1
    bn_gamma = jax.random.normal(kg, (OC,), dtype=jnp.float32) * 0.1 + 1.0
    bn_beta = jax.random.normal(kbe, (OC,), dtype=jnp.float32) * 0.1
    bn_mean = jax.random.normal(km, (OC,), dtype=jnp.float32) * 0.1
    bn_var = jnp.abs(jax.random.normal(kv, (OC,), dtype=jnp.float32)) + 0.5

    out = rep_conv_bn_block(
        x, conv_w, conv_b, bn_gamma, bn_beta, bn_mean, bn_var, activate="relu"
    )
    out = jax.block_until_ready(out)

    ref = _reference(x, conv_w, conv_b, bn_gamma, bn_beta, bn_mean, bn_var)
    assert out.shape == (N, OC, H, W)
    assert jnp.allclose(out, ref, atol=1e-4, rtol=1e-4), "mismatch vs reference"

    print("KERNEL_OK")
</pallas_src>

<mosaic_0001>
module attributes {stable_mosaic.version = 11 : i64} {
  func.func @_rep_conv_bn_kernel(%arg0: i32, %arg1: i32, %arg2: memref<1x4x432xf32, #tpu.memory_space<vmem>>, %arg3: memref<8x36xf32, #tpu.memory_space<vmem>>, %arg4: memref<8x1xf32, #tpu.memory_space<vmem>>, %arg5: memref<1x8x384xf32, #tpu.memory_space<vmem>>, %arg6: memref<36x384xf32, #tpu.memory_space<vmem>>) attributes {dimension_semantics = [#tpu.dimension_semantics<parallel>, #tpu.dimension_semantics<parallel>], iteration_bounds = array<i64: 2, 1>, scalar_prefetch = 0 : i64, scratch_operands = 1 : i64, tpu.core_type = #tpu.core_type<tc>, window_params = [{transform_indices = @transform_0, window_bounds = array<i64: 1, 4, 432>}, {transform_indices = @transform_1, window_bounds = array<i64: 8, 36>}, {transform_indices = @transform_2, window_bounds = array<i64: 8, 1>}, {transform_indices = @transform_3, window_bounds = array<i64: 1, 8, 384>}]} {
    %c0 = arith.constant 0 : index
    %c0_0 = arith.constant 0 : index
    %c0_1 = arith.constant 0 : index
    %0 = vector.load %arg2[%c0, %c0_0, %c0_1] : memref<1x4x432xf32, #tpu.memory_space<vmem>>, vector<1x4x432xf32>
    %1 = vector.shape_cast %0 : vector<1x4x432xf32> to vector<4x432xf32>
    %2 = vector.extract_strided_slice %1 {offsets = [0, 0], sizes = [4, 384], strides = [1, 1]} : vector<4x432xf32> to vector<4x384xf32>
    %c0_2 = arith.constant 0 : index
    %c0_3 = arith.constant 0 : index
    %3 = vector.load %arg6[%c0_2, %c0_3] : memref<36x384xf32, #tpu.memory_space<vmem>>, vector<4x384xf32>
    tpu.vector_store %arg6[%c0_2, %c0_3], %2 {strides = array<i32>} : memref<36x384xf32, #tpu.memory_space<vmem>>, vector<4x384xf32>,
    %4 = vector.extract_strided_slice %1 {offsets = [0, 1], sizes = [4, 384], strides = [1, 1]} : vector<4x432xf32> to vector<4x384xf32>
    %c4 = arith.constant 4 : index
    %c0_4 = arith.constant 0 : index
    %5 = vector.load %arg6[%c4, %c0_4] : memref<36x384xf32, #tpu.memory_space<vmem>>, vector<4x384xf32>
    tpu.vector_store %arg6[%c4, %c0_4], %4 {strides = array<i32>} : memref<36x384xf32, #tpu.memory_space<vmem>>, vector<4x384xf32>,
    %6 = vector.extract_strided_slice %1 {offsets = [0, 2], sizes = [4, 384], strides = [1, 1]} : vector<4x432xf32> to vector<4x384xf32>
    %c8 = arith.constant 8 : index
    %c0_5 = arith.constant 0 : index
    %7 = vector.load %arg6[%c8, %c0_5] : memref<36x384xf32, #tpu.memory_space<vmem>>, vector<4x384xf32>
    tpu.vector_store %arg6[%c8, %c0_5], %6 {strides = array<i32>} : memref<36x384xf32, #tpu.memory_space<vmem>>, vector<4x384xf32>,
    %8 = vector.extract_strided_slice %1 {offsets = [0, 18], sizes = [4, 384], strides = [1, 1]} : vector<4x432xf32> to vector<4x384xf32>
    %c12 = arith.constant 12 : index
    %c0_6 = arith.constant 0 : index
    %9 = vector.load %arg6[%c12, %c0_6] : memref<36x384xf32, #tpu.memory_space<vmem>>, vector<4x384xf32>
    tpu.vector_store %arg6[%c12, %c0_6], %8 {strides = array<i32>} : memref<36x384xf32, #tpu.memory_space<vmem>>, vector<4x384xf32>,
    %10 = vector.extract_strided_slice %1 {offsets = [0, 19], sizes = [4, 384], strides = [1, 1]} : vector<4x432xf32> to vector<4x384xf32>
    %c16 = arith.constant 16 : index
    %c0_7 = arith.constant 0 : index
    %11 = vector.load %arg6[%c16, %c0_7] : memref<36x384xf32, #tpu.memory_space<vmem>>, vector<4x384xf32>
    tpu.vector_store %arg6[%c16, %c0_7], %10 {strides = array<i32>} : memref<36x384xf32, #tpu.memory_space<vmem>>, vector<4x384xf32>,
    %12 = vector.extract_strided_slice %1 {offsets = [0, 20], sizes = [4, 384], strides = [1, 1]} : vector<4x432xf32> to vector<4x384xf32>
    %c20 = arith.constant 20 : index
    %c0_8 = arith.constant 0 : index
    %13 = vector.load %arg6[%c20, %c0_8] : memref<36x384xf32, #tpu.memory_space<vmem>>, vector<4x384xf32>
    tpu.vector_store %arg6[%c20, %c0_8], %12 {strides = array<i32>} : memref<36x384xf32, #tpu.memory_space<vmem>>, vector<4x384xf32>,
    %14 = vector.extract_strided_slice %1 {offsets = [0, 36], sizes = [4, 384], strides = [1, 1]} : vector<4x432xf32> to vector<4x384xf32>
    %c24 = arith.constant 24 : index
    %c0_9 = arith.constant 0 : index
    %15 = vector.load %arg6[%c24, %c0_9] : memref<36x384xf32, #tpu.memory_space<vmem>>, vector<4x384xf32>
    tpu.vector_store %arg6[%c24, %c0_9], %14 {strides = array<i32>} : memref<36x384xf32, #tpu.memory_space<vmem>>, vector<4x384xf32>,
    %16 = vector.extract_strided_slice %1 {offsets = [0, 37], sizes = [4, 384], strides = [1, 1]} : vector<4x432xf32> to vector<4x384xf32>
    %c28 = arith.constant 28 : index
    %c0_10 = arith.constant 0 : index
    %17 = vector.load %arg6[%c28, %c0_10] : memref<36x384xf32, #tpu.memory_space<vmem>>, vector<4x384xf32>
    tpu.vector_store %arg6[%c28, %c0_10], %16 {strides = array<i32>} : memref<36x384xf32, #tpu.memory_space<vmem>>, vector<4x384xf32>,
    %18 = vector.extract_strided_slice %1 {offsets = [0, 38], sizes = [4, 384], strides = [1, 1]} : vector<4x432xf32> to vector<4x384xf32>
    %c32 = arith.constant 32 : index
    %c0_11 = arith.constant 0 : index
    %19 = vector.load %arg6[%c32, %c0_11] : memref<36x384xf32, #tpu.memory_space<vmem>>, vector<4x384xf32>
    tpu.vector_store %arg6[%c32, %c0_11], %18 {strides = array<i32>} : memref<36x384xf32, #tpu.memory_space<vmem>>, vector<4x384xf32>,
    %c0_12 = arith.constant 0 : index
    %c0_13 = arith.constant 0 : index
    %20 = vector.load %arg3[%c0_12, %c0_13] : memref<8x36xf32, #tpu.memory_space<vmem>>, vector<8x36xf32>
    %c0_14 = arith.constant 0 : index
    %c0_15 = arith.constant 0 : index
    %21 = vector.load %arg6[%c0_14, %c0_15] : memref<36x384xf32, #tpu.memory_space<vmem>>, vector<36x384xf32>
    %cst = arith.constant dense<0.000000e+00> : vector<8x384xf32>
    %22 = tpu.matmul %20, %21, %cst {dimension_numbers = #tpu.dot_dimension_numbers<[1], [0], [0], [1], [0, 0, 1, 1], [], []>} : vector<8x36xf32>, vector<36x384xf32>, vector<8x384xf32> -> vector<8x384xf32>
    %c0_16 = arith.constant 0 : index
    %c0_17 = arith.constant 0 : index
    %23 = vector.load %arg4[%c0_16, %c0_17] : memref<8x1xf32, #tpu.memory_space<vmem>>, vector<8x1xf32>
    %24 = vector.broadcast %23 : vector<8x1xf32> to vector<8x384xf32>
    %25 = arith.addf %22, %24 : vector<8x384xf32>
    %cst_18 = arith.constant 0.000000e+00 : f32
    %26 = vector.broadcast %cst_18 : f32 to vector<8x384xf32>
    %27 = arith.maximumf %25, %26 : vector<8x384xf32>
    %c0_19 = arith.constant 0 : index
    %c0_20 = arith.constant 0 : index
    %c0_21 = arith.constant 0 : index
    %28 = vector.load %arg5[%c0_19, %c0_20, %c0_21] : memref<1x8x384xf32, #tpu.memory_space<vmem>>, vector<1x8x384xf32>
    %29 = vector.shape_cast %28 : vector<1x8x384xf32> to vector<8x384xf32>
    %30 = vector.shape_cast %27 : vector<8x384xf32> to vector<1x8x384xf32>
    tpu.vector_store %arg5[%c0_19, %c0_20, %c0_21], %30 {strides = array<i32>} : memref<1x8x384xf32, #tpu.memory_space<vmem>>, vector<1x8x384xf32>,
    return
  }
  func.func @transform_0(%arg0: i32, %arg1: i32) -> (i32, i32, i32) {
    %c0_i32 = arith.constant 0 : i32
    %c0_i32_0 = arith.constant 0 : i32
    %c0_i32_1 = arith.constant 0 : i32
    return %arg0, %c0_i32, %c0_i32_0 : i32, i32, i32
  }
  func.func @transform_1(%arg0: i32, %arg1: i32) -> (i32, i32) {
    %c0_i32 = arith.constant 0 : i32
    %c0_i32_0 = arith.constant 0 : i32
    return %arg1, %c0_i32 : i32, i32
  }
  func.func @transform_2(%arg0: i32, %arg1: i32) -> (i32, i32) {
    %c0_i32 = arith.constant 0 : i32
    %c0_i32_0 = arith.constant 0 : i32
    return %arg1, %c0_i32 : i32, i32
  }
  func.func @transform_3(%arg0: i32, %arg1: i32) -> (i32, i32, i32) {
    %c0_i32 = arith.constant 0 : i32
    %c0_i32_0 = arith.constant 0 : i32
    return %arg0, %arg1, %c0_i32 : i32, i32, i32
  }
}

</mosaic_0001>

<llo_original>
// kernel: tpu_custom_call.1
$region0: #{tpu_custom_call.1}
  #allocation0 [shape = 'u32[]', space=smem, size = 0x4, offset = 0x4, fixed_abs, tag = 'smem constant byte address 0x4 - core index']
  #allocation1 [shape = 'u32[144,128]{1,0:T(1,128)}', space=vmem, size = 0x12000, scoped, tag = 'internal scratch']
  #allocation2 [shape = 'f32[36,384]{1,0:T(8,128)}', space=vmem, size = 0xf000, scoped, tag = 'scratch operand']
  %s0 = inlined_call_operand.hbm [shape: f32[2,4,432], index: 0, kind: input, shape index: {}]
  %s1 = inlined_call_operand.vmem [shape: f32[8,36], index: 1, kind: input, shape index: {}]
  %s2 = inlined_call_operand.vmem [shape: f32[8,1], index: 2, kind: input, shape index: {}]
  %s3 = inlined_call_operand.hbm [shape: f32[2,8,384], index: 3, kind: output, shape index: {}]
  %s4 = sld [smem:[#allocation0]]
  $region49: #{tpu_custom_call.1} parent=0
    _
  %s6 = ssub.s32 1, %s4
  %s7 = scalar_select 0, %s6, %s4
  $region1: #{tpu_custom_call.1} parent=0
    #allocation3 [shape = 'u8[16384]{0}', space=vmem, size = 0x4000, scoped, tag = 'input window, operand 0']
    #allocation4 [shape = 's32[2]{0}', space=sflag, size = 0x8, scoped, tag = 'scoped memory for tpu_custom_call.1']
    #allocation5 [shape = 's32[2]{0}', space=sflag, size = 0x8, scoped, tag = 'scoped memory for tpu_custom_call.1']
    #allocation6 [shape = 'u8[24576]{0}', space=vmem, size = 0x6000, scoped, tag = 'output window, operand 0']
    %8 = vsyncpa [#allocation4], 0
    %s9 = scalar_lea.sflag [#allocation4], 1
    %10 = vsyncpa %s9, 0
    %11 = vsyncpa [#allocation5], 0
    %s12 = scalar_lea.sflag [#allocation5], 1
    %13 = vsyncpa %s12, 0
    loop: start=0, step=1, limit=4
    $region2: #{tpu_custom_call.1} parent=1 // loop_pre_header
      _
    $region3: #{tpu_custom_call.1} parent=1 // loop_header
      %s15 = sphi 0, %s19
      %p16 = scmp.ge.s32.totalorder %s15, 4
      %s22 = sphi 0, %s34
      %s23 = sphi 0, %s30
      %s24 = sphi 0, %s22
      %s25 = sphi 0, %s23
      %s26 = sphi 0, %s24
      %s27 = sphi 0, %s25
      %s37 = sphi 0, %s39
      %s40 = sphi 0, %s37
      %s41 = sphi 0, %s40
      %s57 = sphi 0, %s41
      %s63 = sphi 0, %s65
      %s66 = sphi 0, %s63
      %s67 = sphi 0, %s66
      %s83 = sphi 0, %s67
      %s89 = sphi 0, %s91
      %s92 = sphi 0, %s89
      %s93 = sphi 0, %s92
      %s109 = sphi 0, %s93
      %s117 = sphi 0, %s119
      %s120 = sphi 0, %s117
      %s121 = sphi 0, %s120
      %s137 = sphi 0, %s121
    $region4: #{tpu_custom_call.1} parent=1 // loop_header_branch
      %18 = sbr.rel (%p16) target = $region8
    $region5: #{tpu_custom_call.1} parent=1 // loop_body
      %s20 = ssub.s32 %s15, 1
      %s21 = ssub.s32 %s15, 2
      %s28 = sadd.s32 1, %s23
      %p29 = scmp.ge.s32.totalorder %s28, 1
      %s30 = scalar_select %p29, 0, %s28
      %s31 = sadd.s32 1, %s22
      %s32 = scalar_select %p29, %s31, %s22
      %p33 = scmp.ge.s32.totalorder %s32, 2
      %s34 = scalar_select %p33, 0, %s32
      %s35 = ssub.s32 %s22, %s34
      %p36 = scmp.eq.s32.totalorder %s35, 0
      %s38 = sadd.s32 %s37, 1
      %s39 = scalar_select %p36, %s37, %s38
      %p42 = pneg %p36
      %p43 = scmp.eq.s32.totalorder %s15, 1
      %p44 = por %p42, %p43
      %p45 = scmp.ne.s32.totalorder %s37, %s40
      %p46 = scmp.eq.s32.totalorder %s15, 0
      %p47 = por %p45, %p46
      %p48 = scmp.ne.s32.totalorder %s37, %s40
      %p49 = scmp.eq.s32.totalorder %s20, 1
      %p50 = por %p48, %p49
      %p51 = scmp.ne.s32.totalorder %s40, %s41
      %p52 = scmp.eq.s32.totalorder %s20, 0
      %p53 = por %p51, %p52
      %p54 = scmp.ne.s32.totalorder %s40, %s41
      %p55 = scmp.eq.s32.totalorder %s21, 1
      %p56 = por %p54, %p55
      %p58 = scmp.ne.s32.totalorder %s41, %s57
      %p59 = scmp.eq.s32.totalorder %s21, 0
      %p60 = por %p58, %p59
      %s61 = ssub.s32 %s23, %s30
      %p62 = scmp.eq.s32.totalorder %s61, 0
      %s64 = sadd.s32 %s63, 1
      %s65 = scalar_select %p62, %s63, %s64
      %p68 = pneg %p62
      %p69 = scmp.eq.s32.totalorder %s15, 1
      %p70 = por %p68, %p69
      %p71 = scmp.ne.s32.totalorder %s63, %s66
      %p72 = scmp.eq.s32.totalorder %s15, 0
      %p73 = por %p71, %p72
      %p74 = scmp.ne.s32.totalorder %s63, %s66
      %p75 = scmp.eq.s32.totalorder %s20, 1
      %p76 = por %p74, %p75
      %p77 = scmp.ne.s32.totalorder %s66, %s67
      %p78 = scmp.eq.s32.totalorder %s20, 0
      %p79 = por %p77, %p78
      %p80 = scmp.ne.s32.totalorder %s66, %s67
      %p81 = scmp.eq.s32.totalorder %s21, 1
      %p82 = por %p80, %p81
      %p84 = scmp.ne.s32.totalorder %s67, %s83
      %p85 = scmp.eq.s32.totalorder %s21, 0
      %p86 = por %p84, %p85
      %s87 = ssub.s32 %s23, %s30
      %p88 = scmp.eq.s32.totalorder %s87, 0
      %s90 = sadd.s32 %s89, 1
      %s91 = scalar_select %p88, %s89, %s90
      %p94 = pneg %p88
      %p95 = scmp.eq.s32.totalorder %s15, 1
      %p96 = por %p94, %p95
      %p97 = scmp.ne.s32.totalorder %s89, %s92
      %p98 = scmp.eq.s32.totalorder %s15, 0
      %p99 = por %p97, %p98
      %p100 = scmp.ne.s32.totalorder %s89, %s92
      %p101 = scmp.eq.s32.totalorder %s20, 1
      %p102 = por %p100, %p101
      %p103 = scmp.ne.s32.totalorder %s92, %s93
      %p104 = scmp.eq.s32.totalorder %s20, 0
      %p105 = por %p103, %p104
      %p106 = scmp.ne.s32.totalorder %s92, %s93
      %p107 = scmp.eq.s32.totalorder %s21, 1
      %p108 = por %p106, %p107
      %p110 = scmp.ne.s32.totalorder %s93, %s109
      %p111 = scmp.eq.s32.totalorder %s21, 0
      %p112 = por %p110, %p111
      %s113 = ssub.s32 %s22, %s34
      %s114 = ssub.s32 %s23, %s30
      %s115 = sor.u32 %s113, %s114
      %p116 = scmp.eq.s32.totalorder %s115, 0
      %s118 = sadd.s32 %s117, 1
      %s119 = scalar_select %p116, %s117, %s118
      %p122 = pneg %p116
      %p123 = scmp.eq.s32.totalorder %s15, 1
      %p124 = por %p122, %p123
      %p125 = scmp.ne.s32.totalorder %s117, %s120
      %p126 = scmp.eq.s32.totalorder %s15, 0
      %p127 = por %p125, %p126
      %p128 = scmp.ne.s32.totalorder %s117, %s120
      %p129 = scmp.eq.s32.totalorder %s20, 1
      %p130 = por %p128, %p129
      %p131 = scmp.ne.s32.totalorder %s120, %s121
      %p132 = scmp.eq.s32.totalorder %s20, 0
      %p133 = por %p131, %p132
      %p134 = scmp.ne.s32.totalorder %s120, %s121
      %p135 = scmp.eq.s32.totalorder %s21, 1
      %p136 = por %p134, %p135
      %p138 = scmp.ne.s32.totalorder %s121, %s137
      %p139 = scmp.eq.s32.totalorder %s21, 0
      %p140 = por %p138, %p139
      %p141 = scmp.le.s32.totalorder 1, %s15
      %p142 = scmp.lt.s32.totalorder %s15, 3
      %p143 = pnand %p141, %p142
      %p144 = pneg %p143
      // Predicated region
      $region9: #{tpu_custom_call.1} parent=5 // pred_check
        _
      $region10: #{tpu_custom_call.1} parent=5 // pred_check_branch
        %146 = sbr.rel (%p143) target = $region12
      $region11: #{tpu_custom_call.1} parent=5 // pred_region
        %s147 = ssub.s32 %s15, 1
        // Predicated region
        $region13: #{tpu_custom_call.1} parent=11 // pred_check
          %p148 = pneg %p79
        $region14: #{tpu_custom_call.1} parent=11 // pred_check_branch
          %150 = sbr.rel (%p148) target = $region16
        $region15: #{tpu_custom_call.1} parent=11 // pred_region
          %p151 = scmp.lt.s32.totalorder %s25, 0
          %s152 = scalar_select %p151, %s25, 0
          %s153 = smul.addr %s152, 8
          %s154 = scalar_lea.vmem %s1, %s153
        $region16: #{tpu_custom_call.1} parent=11 // pred_fallthru
          _
        // Predicated region
        $region17: #{tpu_custom_call.1} parent=11 // pred_check
          %p155 = pneg %p105
        $region18: #{tpu_custom_call.1} parent=11 // pred_check_branch
          %157 = sbr.rel (%p155) target = $region20
        $region19: #{tpu_custom_call.1} parent=11 // pred_region
          %p158 = scmp.lt.s32.totalorder %s25, 0
          %s159 = scalar_select %p158, %s25, 0
          %s160 = smul.addr %s159, 8
          %s161 = scalar_lea.vmem %s2, %s160
        $region20: #{tpu_custom_call.1} parent=11 // pred_fallthru
          _
      $region12: #{tpu_custom_call.1} parent=5 // pred_fallthru
        _
      %p162 = scmp.lt.s32.totalorder %s15, 2
      // Predicated region
      $region21: #{tpu_custom_call.1} parent=5 // pred_check
        %p163 = pneg %p162
      $region22: #{tpu_custom_call.1} parent=5 // pred_check_branch
        %165 = sbr.rel (%p163) target = $region24
      $region23: #{tpu_custom_call.1} parent=5 // pred_region
        // Predicated region
        $region25: #{tpu_custom_call.1} parent=23 // pred_check
          %p166 = pneg %p47
        $region26: #{tpu_custom_call.1} parent=23 // pred_check_branch
          %168 = sbr.rel (%p166) target = $region28
        $region27: #{tpu_custom_call.1} parent=23 // pred_region
          %s169 = sand.u32 %s37, 1
          %s170 = scalar_lea.sflag [#allocation4], %s169
          %s171 = sand.u32 %s37, 1
          %s172 = smul.addr %s171, 16
          %s173 = scalar_lea.vmem [#allocation3], %s172
          %s175 = ssub.s32 256, 256
          %176 = vsyncadd %s170, %s175
          %s177 = smul.addr %s22, 4
          %s178 = smul.addr %s177, 64
          %s179 = scalar_lea.hbm %s0, %s178
          %s181 = sshll.u32 %s173, 4
          %s182 = int_to_ptr.vmem [resolvable:$true] %s181
          %184 = dma.hbm_to_vmem [thread:$0]  %s179, 256, %s182, %s170
        $region28: #{tpu_custom_call.1} parent=23 // pred_fallthru
          _
      $region24: #{tpu_custom_call.1} parent=5 // pred_fallthru
        _
      %p185 = scmp.le.s32.totalorder 1, %s15
      %p186 = scmp.lt.s32.totalorder %s15, 3
      %p187 = pnand %p185, %p186
      %p188 = pneg %p187
      // Predicated region
      $region29: #{tpu_custom_call.1} parent=5 // pred_check
        _
      $region30: #{tpu_custom_call.1} parent=5 // pred_check_branch
        %190 = sbr.rel (%p187) target = $region32
      $region31: #{tpu_custom_call.1} parent=5 // pred_region
        %s191 = ssub.s32 %s15, 1
        %s192 = sand.u32 %s40, 1
        %s193 = scalar_lea.sflag [#allocation4], %s192
        %s194 = sand.u32 %s40, 1
        %s195 = smul.addr %s194, 16
        %s196 = scalar_lea.vmem [#allocation3], %s195
        // Predicated region
        $region33: #{tpu_custom_call.1} parent=31 // pred_check
          %p197 = pneg %p53
        $region34: #{tpu_custom_call.1} parent=31 // pred_check_branch
          %199 = sbr.rel (%p197) target = $region36
        $region35: #{tpu_custom_call.1} parent=31 // pred_region
          %200 = dma.done %s193, 256
        $region36: #{tpu_custom_call.1} parent=31 // pred_fallthru
          _
        %s201 = sand.u32 %s40, 1
        %s202 = scalar_lea.sflag [#allocation4], %s201
        %s203 = sand.u32 %s40, 1
        %s204 = smul.addr %s203, 16
        %s205 = scalar_lea.vmem [#allocation3], %s204
        %p206 = pneg %p53
        %p207 = pneg %p50
        %p208 = scmp.lt.s32.totalorder %s25, 0
        %s209 = scalar_select %p208, %s25, 0
        %s210 = smul.addr %s209, 8
        %s211 = scalar_lea.vmem %s1, %s210
        %p212 = pneg %p79
        %p213 = pneg %p76
        %p214 = scmp.lt.s32.totalorder %s25, 0
        %s215 = scalar_select %p214, %s25, 0
        %s216 = smul.addr %s215, 8
        %s217 = scalar_lea.vmem %s2, %s216
        %p218 = pneg %p105
        %p219 = pneg %p102
        %p220 = pneg %p133
        %p221 = pneg %p130
        %s222 = sand.u32 %s120, 1
        %s223 = scalar_lea.sflag [#allocation5], %s222
        %s224 = sand.u32 %s120, 1
        %s225 = smul.addr %s224, 24
        %s226 = scalar_lea.vmem [#allocation6], %s225
        %p227 = scmp.lt.s32.totalorder %s25, 0
        %s228 = scalar_select %p227, %s25, 0
        %s229 = smul.addr %s228, 8
        %s230 = scalar_lea.vmem %s1, %s229
        %p231 = scmp.lt.s32.totalorder %s25, 0
        %s232 = scalar_select %p231, %s25, 0
        %s233 = smul.addr %s232, 8
        %s234 = scalar_lea.vmem %s2, %s233
        %v235 = vld [vmem:[%s196] sm:$0xff]
        %v236 = vld [vmem:[%s196 + $0x8] sm:$0xff]
        %v239 = vcombine.high %v235, %v235
        %241 = vst [vmem:[#allocation2] sm:$0xf] %v235
        %242 = vst [vmem:[#allocation2 + $0x8] sm:$0xf] %v239
        %243 = vst [vmem:[#allocation2 + $0x10] sm:$0xf] %v236
        %v244 = vcombine.low %v235, %v235
        %v245 = vcombine.low %v236, %v236
        %246 = vrot.lane.b32.xlu0 %v244, 127
        %v247 = vpop.permute.xlu0 %246
        %248 = vrot.lane.b32.xlu0 %v235, 127
        %v249 = vpop.permute.xlu0 %248
        %250 = vrot.lane.b32.xlu0 %v245, 127
        %v251 = vpop.permute.xlu0 %250
        %252 = vrot.lane.b32.xlu0 %v236, 127
        %v253 = vpop.permute.xlu0 %252
        %vm254 = vcmask 1039360
        %v255 = vsel %vm254, %v247, %v249
        %v256 = vsel %vm254, %v249, %v251
        %v257 = vsel %vm254, %v251, %v253
        %261 = vst [vmem:[#allocation2] sm:$0xf0] %v255
        %262 = vst [vmem:[#allocation2 + $0x8] sm:$0xf0] %v256
        %263 = vst [vmem:[#allocation2 + $0x10] sm:$0xf0] %v257
        %v264 = vcombine.high %v236, %v236
        %265 = vrot.lane.b32.xlu0 %v235, 126
        %v266 = vpop.permute.xlu0 %265
        %267 = vrot.lane.b32.xlu0 %v239, 126
        %v268 = vpop.permute.xlu0 %267
        %269 = vrot.lane.b32.xlu0 %v236, 126
        %v270 = vpop.permute.xlu0 %269
        %271 = vrot.lane.b32.xlu0 %v264, 126
        %v272 = vpop.permute.xlu0 %271
        %vm273 = vcmask 1031168
        %v274 = vsel %vm273, %v266, %v268
        %v275 = vsel %vm273, %v268, %v270
        %v276 = vsel %vm273, %v270, %v272
        %280 = vst [vmem:[#allocation2 + $0x18] sm:$0xf] %v274
        %281 = vst [vmem:[#allocation2 + $0x20] sm:$0xf] %v275
        %282 = vst [vmem:[#allocation2 + $0x28] sm:$0xf] %v276
        %283 = vrot.lane.b32.xlu0 %v244, 110
        %v284 = vpop.permute.xlu0 %283
        %285 = vrot.lane.b32.xlu0 %v235, 110
        %v286 = vpop.permute.xlu0 %285
        %287 = vrot.lane.b32.xlu0 %v245, 110
        %v288 = vpop.permute.xlu0 %287
        %289 = vrot.lane.b32.xlu0 %v236, 110
        %v290 = vpop.permute.xlu0 %289
        %vm291 = vcmask 900096
        %v292 = vsel %vm291, %v284, %v286
        %v293 = vsel %vm291, %v286, %v288
        %v294 = vsel %vm291, %v288, %v290
        %298 = vst [vmem:[#allocation2 + $0x18] sm:$0xf0] %v292
        %299 = vst [vmem:[#allocation2 + $0x20] sm:$0xf0] %v293
        %300 = vst [vmem:[#allocation2 + $0x28] sm:$0xf0] %v294
        %301 = vrot.lane.b32.xlu0 %v235, 109
        %v302 = vpop.permute.xlu0 %301
        %303 = vrot.lane.b32.xlu0 %v239, 109
        %v304 = vpop.permute.xlu0 %303
        %305 = vrot.lane.b32.xlu0 %v236, 109
        %v306 = vpop.permute.xlu0 %305
        %307 = vrot.lane.b32.xlu0 %v264, 109
        %v308 = vpop.permute.xlu0 %307
        %vm309 = vcmask 891904
        %v310 = vsel %vm309, %v302, %v304
        %v311 = vsel %vm309, %v304, %v306
        %v312 = vsel %vm309, %v306, %v308
        %316 = vst [vmem:[#allocation2 + $0x30] sm:$0xf] %v310
        %317 = vst [vmem:[#allocation2 + $0x38] sm:$0xf] %v311
        %318 = vst [vmem:[#allocation2 + $0x40] sm:$0xf] %v312
        %319 = vrot.lane.b32.xlu0 %v244, 108
        %v320 = vpop.permute.xlu0 %319
        %321 = vrot.lane.b32.xlu0 %v235, 108
        %v322 = vpop.permute.xlu0 %321
        %323 = vrot.lane.b32.xlu0 %v245, 108
        %v324 = vpop.permute.xlu0 %323
        %325 = vrot.lane.b32.xlu0 %v236, 108
        %v326 = vpop.permute.xlu0 %325
        %vm327 = vcmask 883712
        %v328 = vsel %vm327, %v320, %v322
        %v329 = vsel %vm327, %v322, %v324
        %v330 = vsel %vm327, %v324, %v326
        %334 = vst [vmem:[#allocation2 + $0x30] sm:$0xf0] %v328
        %335 = vst [vmem:[#allocation2 + $0x38] sm:$0xf0] %v329
        %336 = vst [vmem:[#allocation2 + $0x40] sm:$0xf0] %v330
        %337 = vrot.lane.b32.xlu0 %v235, 92
        %v338 = vpop.permute.xlu0 %337
        %339 = vrot.lane.b32.xlu0 %v239, 92
        %v340 = vpop.permute.xlu0 %339
        %341 = vrot.lane.b32.xlu0 %v236, 92
        %v342 = vpop.permute.xlu0 %341
        %343 = vrot.lane.b32.xlu0 %v264, 92
        %v344 = vpop.permute.xlu0 %343
        %vm345 = vcmask 752640
        %v346 = vsel %vm345, %v338, %v340
        %v347 = vsel %vm345, %v340, %v342
        %v348 = vsel %vm345, %v342, %v344
        %352 = vst [vmem:[#allocation2 + $0x48] sm:$0xf] %v346
        %353 = vst [vmem:[#allocation2 + $0x50] sm:$0xf] %v347
        %354 = vst [vmem:[#allocation2 + $0x58] sm:$0xf] %v348
        %355 = vrot.lane.b32.xlu0 %v244, 91
        %v356 = vpop.permute.xlu0 %355
        %357 = vrot.lane.b32.xlu0 %v235, 91
        %v358 = vpop.permute.xlu0 %357
        %359 = vrot.lane.b32.xlu0 %v245, 91
        %v360 = vpop.permute.xlu0 %359
        %361 = vrot.lane.b32.xlu0 %v236, 91
        %v362 = vpop.permute.xlu0 %361
        %vm363 = vcmask 744448
        %v364 = vsel %vm363, %v356, %v358
        %v365 = vsel %vm363, %v358, %v360
        %v366 = vsel %vm363, %v360, %v362
        %370 = vst [vmem:[#allocation2 + $0x48] sm:$0xf0] %v364
        %371 = vst [vmem:[#allocation2 + $0x50] sm:$0xf0] %v365
        %372 = vst [vmem:[#allocation2 + $0x58] sm:$0xf0] %v366
        %373 = vrot.lane.b32.xlu0 %v235, 90
        %v374 = vpop.permute.xlu0 %373
        %375 = vrot.lane.b32.xlu0 %v239, 90
        %v376 = vpop.permute.xlu0 %375
        %377 = vrot.lane.b32.xlu0 %v236, 90
        %v378 = vpop.permute.xlu0 %377
        %379 = vrot.lane.b32.xlu0 %v264, 90
        %v380 = vpop.permute.xlu0 %379
        %vm381 = vcmask 736256
        %v382 = vsel %vm381, %v374, %v376
        %v383 = vsel %vm381, %v376, %v378
        %v384 = vsel %vm381, %v378, %v380
        %388 = vst [vmem:[#allocation2 + $0x60] sm:$0xf] %v382
        %389 = vst [vmem:[#allocation2 + $0x68] sm:$0xf] %v383
        %390 = vst [vmem:[#allocation2 + $0x70] sm:$0xf] %v384
        %v391 = vld [vmem:[%s230] sm:$0xff]
        %v392 = vld [vmem:[#allocation2] sm:$0xff]
        %v393 = vld [vmem:[#allocation2 + $0x8] sm:$0xff]
        %v394 = vld [vmem:[#allocation2 + $0x10] sm:$0xff]
        %v395 = vld [vmem:[#allocation2 + $0x18] sm:$0xff]
        %v396 = vld [vmem:[#allocation2 + $0x20] sm:$0xff]
        %v397 = vld [vmem:[#allocation2 + $0x28] sm:$0xff]
        %v398 = vld [vmem:[#allocation2 + $0x30] sm:$0xff]
        %v399 = vld [vmem:[#allocation2 + $0x38] sm:$0xff]
        %v400 = vld [vmem:[#allocation2 + $0x40] sm:$0xff]
        %v401 = vld [vmem:[#allocation2 + $0x48] sm:$0xff]
        %v402 = vld [vmem:[#allocation2 + $0x50] sm:$0xff]
        %v403 = vld [vmem:[#allocation2 + $0x58] sm:$0xff]
        %v404 = vld [vmem:[#allocation2 + $0x60] sm:$0xf]
        %v405 = vld [vmem:[#allocation2 + $0x68] sm:$0xf]
        %v406 = vld [vmem:[#allocation2 + $0x70] sm:$0xf]
        %v407 = vld [vmem:[%s234] sm:$0xff]
        %409 = vset.pattern.permute.xlu0 0
        %410 = vperm.xlu0 %409, %v407
        %v411 = vpop.permute.xlu0 %410
        %vm413 = vcmask 293888
        %v415 = vsel %vm413, %v391, 0
        %vm417 = vcmask 1043456
        %v419 = vsel %vm417, %v404, 0
        %v422 = vsel %vm417, %v405, 0
        %v425 = vsel %vm417, %v406, 0
        %427 = vmatprep.subr.mxu0 %v393
        %428 = vmatpush1.msra.mxu0 %v392
        %429 = vmatprep.subr.mxu0 %v396
        %430 = vmatpush1.msra.mxu0 %v395
        %431 = vmatprep.subr.mxu0 %v399
        %432 = vmatpush1.msra.mxu0 %v398
        %433 = vmatprep.subr.mxu0 %v402
        %434 = vmatpush1.msra.mxu0 %v401
        %435 = vmatprep.subr.mxu0 %v422
        %436 = vmatpush1.msra.mxu0 %v419
        %437 = vmatprep.subr.mxu0 0.0
        %438 = vmatpush1.msra.mxu0 0.0
        %439 = vmatprep.subr.mxu0 0.0
        %440 = vmatpush1.msra.mxu0 0.0
        %441 = vmatprep.subr.mxu0 0.0
        %442 = vmatpush1.msra.mxu0 0.0
        %443 = vmatprep.subr.mxu0 0.0
        %444 = vmatpush1.msra.mxu0 0.0
        %445 = vmatprep.subr.mxu0 0.0
        %446 = vmatpush1.msra.mxu0 0.0
        %447 = vmatprep.subr.mxu0 0.0
        %448 = vmatpush1.msra.mxu0 0.0
        %449 = vmatprep.subr.mxu0 0.0
        %450 = vmatpush1.msra.mxu0 0.0
        %451 = vmatprep.subr.mxu0 0.0
        %452 = vmatpush1.msra.mxu0 0.0
        %453 = vmatprep.subr.mxu0 0.0
        %454 = vmatpush1.msra.mxu0 0.0
        %455 = vmatprep.subr.mxu0 0.0
        %456 = vmatpush1.msra.mxu0 0.0
        %457 = vmatprep.subr.mxu0 0.0
        %458 = vmatpush1.msra.mxu0 0.0
        %459 = vmatprep.subr.mxu0 0.0
        %460 = vmatpush1.msra.mxu0 0.0
        %461 = vmatprep.subr.mxu0 0.0
        %462 = vmatpush1.msra.mxu0 0.0
        %463 = vmatprep.subr.mxu0 0.0
        %464 = vmatpush1.msra.mxu0 0.0
        %465 = vmatprep.subr.mxu0 0.0
        %466 = vmatpush1.msra.mxu0 0.0
        %467 = vmatprep.subr.mxu0 0.0
        %468 = vmatpush1.msra.mxu0 0.0
        %469 = vmatprep.subr.mxu0 0.0
        %470 = vmatpush1.msra.mxu0 0.0
        %471 = vmatprep.subr.mxu0 0.0
        %472 = vmatpush1.msra.mxu0 0.0
        %473 = vmatprep.subr.mxu0 0.0
        %474 = vmatpush1.msra.mxu0 0.0
        %475 = vmatprep.subr.mxu0 0.0
        %476 = vmatpush1.msra.mxu0 0.0
        %477 = vmatprep.subr.mxu0 0.0
        %478 = vmatpush1.msra.mxu0 0.0
        %479 = vmatprep.subr.mxu0 0.0
        %480 = vmatpush1.msra.mxu0 0.0
        %481 = vmatprep.subr.mxu0 0.0
        %482 = vmatpush1.msra.mxu0 0.0
        %483 = vmatprep.subr.mxu0 0.0
        %484 = vmatpush1.msra.mxu0 0.0
        %485 = vmatprep.subr.mxu0 0.0
        %486 = vmatpush1.msra.mxu0 0.0
        %487 = vmatprep.subr.mxu0 0.0
        %488 = vmatpush1.msra.mxu0 0.0
        %489 = vmatprep.subr.mxu0 0.0
        %490 = vmatpush1.msra.mxu0 0.0
        %491 = vmatprep.mubr.f32.mxu0 0.0
        %492 = vmatmul.mubr.f32.gmra.mrb[0].mxu0 %v415
        %v493 = vpop.f32.mrb[0].mxu0
        %v494 = vadd.f32 %v411, %v493
        %v495 = vpop.f32.mrb[0].mxu0
        %v496 = vadd.f32 %v411, %v495
        %497 = vdwg.mxu0
        %498 = vmatprep.subr.mxu0 0.0
        %499 = vmatpush1.msra.mxu0 %v394
        %500 = vmatprep.subr.mxu0 0.0
        %501 = vmatpush1.msra.mxu0 %v397
        %502 = vmatprep.subr.mxu0 0.0
        %503 = vmatpush1.msra.mxu0 %v400
        %504 = vmatprep.subr.mxu0 0.0
        %505 = vmatpush1.msra.mxu0 %v403
        %506 = vmatprep.subr.mxu0 0.0
        %507 = vmatpush1.msra.mxu0 %v425
        %508 = vmatprep.subr.mxu0 0.0
        %509 = vmatpush1.msra.mxu0 0.0
        %510 = vmatprep.subr.mxu0 0.0
        %511 = vmatpush1.msra.mxu0 0.0
        %512 = vmatprep.subr.mxu0 0.0
        %513 = vmatpush1.msra.mxu0 0.0
        %514 = vmatprep.subr.mxu0 0.0
        %515 = vmatpush1.msra.mxu0 0.0
        %516 = vmatprep.subr.mxu0 0.0
        %517 = vmatpush1.msra.mxu0 0.0
        %518 = vmatprep.subr.mxu0 0.0
        %519 = vmatpush1.msra.mxu0 0.0
        %520 = vmatprep.subr.mxu0 0.0
        %521 = vmatpush1.msra.mxu0 0.0
        %522 = vmatprep.subr.mxu0 0.0
        %523 = vmatpush1.msra.mxu0 0.0
        %524 = vmatprep.subr.mxu0 0.0
        %525 = vmatpush1.msra.mxu0 0.0
        %526 = vmatprep.subr.mxu0 0.0
        %527 = vmatpush1.msra.mxu0 0.0
        %528 = vmatprep.subr.mxu0 0.0
        %529 = vmatpush1.msra.mxu0 0.0
        %530 = vmatprep.subr.mxu0 0.0
        %531 = vmatpush1.msra.mxu0 0.0
        %532 = vmatprep.subr.mxu0 0.0
        %533 = vmatpush1.msra.mxu0 0.0
        %534 = vmatprep.subr.mxu0 0.0
        %535 = vmatpush1.msra.mxu0 0.0
        %536 = vmatprep.subr.mxu0 0.0
        %537 = vmatpush1.msra.mxu0 0.0
        %538 = vmatprep.subr.mxu0 0.0
        %539 = vmatpush1.msra.mxu0 0.0
        %540 = vmatprep.subr.mxu0 0.0
        %541 = vmatpush1.msra.mxu0 0.0
        %542 = vmatprep.subr.mxu0 0.0
        %543 = vmatpush1.msra.mxu0 0.0
        %544 = vmatprep.subr.mxu0 0.0
        %545 = vmatpush1.msra.mxu0 0.0
        %546 = vmatprep.subr.mxu0 0.0
        %547 = vmatpush1.msra.mxu0 0.0
        %548 = vmatprep.subr.mxu0 0.0
        %549 = vmatpush1.msra.mxu0 0.0
        %550 = vmatprep.subr.mxu0 0.0
        %551 = vmatpush1.msra.mxu0 0.0
        %552 = vmatprep.subr.mxu0 0.0
        %553 = vmatpush1.msra.mxu0 0.0
        %554 = vmatprep.subr.mxu0 0.0
        %555 = vmatpush1.msra.mxu0 0.0
        %556 = vmatprep.subr.mxu0 0.0
        %557 = vmatpush1.msra.mxu0 0.0
        %558 = vmatprep.subr.mxu0 0.0
        %559 = vmatpush1.msra.mxu0 0.0
        %560 = vmatprep.subr.mxu0 0.0
        %561 = vmatpush1.msra.mxu0 0.0
        %562 = vmatprep.mubr.f32.mxu0 0.0
        %563 = vmatmul.mubr.f32.gmra.mrb[0].mxu0 %v415
        %v564 = vpop.f32.mrb[0].mxu0
        %v565 = vadd.f32 %v411, %v564
        %v566 = vpop.f32.mrb[0].mxu0
        %567 = vdwg.mxu0
        %v568 = vmax.f32 %v494, 0.0
        %v569 = vmax.f32 %v496, 0.0
        %v570 = vmax.f32 %v565, 0.0
        %571 = vst [vmem:[%s226] sm:$0xff] %v568
        %572 = vst [vmem:[%s226 + $0x8] sm:$0xff] %v569
        %573 = vst [vmem:[%s226 + $0x10] sm:$0xff] %v570
        %s574 = sand.u32 %s120, 1
        %s575 = scalar_lea.sflag [#allocation5], %s574
        %s576 = sand.u32 %s120, 1
        %s577 = smul.addr %s576, 24
        %s578 = scalar_lea.vmem [#allocation6], %s577
        // Predicated region
        $region37: #{tpu_custom_call.1} parent=31 // pred_check
          %p579 = pneg %p130
        $region38: #{tpu_custom_call.1} parent=31 // pred_check_branch
          %581 = sbr.rel (%p579) target = $region40
        $region39: #{tpu_custom_call.1} parent=31 // pred_region
          %s583 = ssub.s32 384, 384
          %584 = vsyncadd %s575, %s583
          %s585 = smul.addr %s25, 3
          %s586 = smul.addr %s24, 3
          %s587 = sadd.s32 %s585, %s586
          %s588 = smul.addr %s587, 128
          %s589 = scalar_lea.hbm %s3, %s588
          %s591 = sshll.u32 %s578, 4
          %s592 = int_to_ptr.vmem [resolvable:$true] %s591
          %594 = dma.vmem_to_hbm [thread:$0]  %s592, 384, %s589, %s575
        $region40: #{tpu_custom_call.1} parent=31 // pred_fallthru
          _
      $region32: #{tpu_custom_call.1} parent=5 // pred_fallthru
        _
      %p595 = scmp.le.s32.totalorder 2, %s15
      // Predicated region
      $region41: #{tpu_custom_call.1} parent=5 // pred_check
        %p596 = pneg %p595
      $region42: #{tpu_custom_call.1} parent=5 // pred_check_branch
        %598 = sbr.rel (%p596) target = $region44
      $region43: #{tpu_custom_call.1} parent=5 // pred_region
        %s599 = ssub.s32 %s15, 2
        // Predicated region
        $region45: #{tpu_custom_call.1} parent=43 // pred_check
          %p600 = pneg %p136
        $region46: #{tpu_custom_call.1} parent=43 // pred_check_branch
          %602 = sbr.rel (%p600) target = $region48
        $region47: #{tpu_custom_call.1} parent=43 // pred_region
          %s603 = sand.u32 %s121, 1
          %s604 = scalar_lea.sflag [#allocation5], %s603
          %s605 = sand.u32 %s121, 1
          %s606 = smul.addr %s605, 24
          %s607 = scalar_lea.vmem [#allocation6], %s606
          %608 = dma.done %s604, 384
        $region48: #{tpu_custom_call.1} parent=43 // pred_fallthru
          _
      $region44: #{tpu_custom_call.1} parent=5 // pred_fallthru
        _
    $region6: #{tpu_custom_call.1} parent=1 // loop_footer
      %s19 = sadd.s32 1, %s15
    $region7: #{tpu_custom_call.1} parent=1 // loop_footer_branch
      %14 = sbr.rel target = $region3
    $region8: #{tpu_custom_call.1} parent=1 // loop_exit
      _
    %609 = vsyncpa [#allocation4], 1
    %s610 = scalar_lea.sflag [#allocation4], 1
    %611 = vsyncpa %s610, 1
    %612 = vsyncpa [#allocation5], 1
    %s613 = scalar_lea.sflag [#allocation5], 1
    %614 = vsyncpa %s613, 1

</llo_original>
